<compile_context>
chip_gen: v7x
topology: tpu7x:2x2x1
jax: 0.10.0
libtpu: 0.0.40
codegen_flags: <defaults>
</compile_context>

<pallas_src>
import math

import jax
import jax.numpy as jnp
from jax.experimental import pallas as pl
from jax.experimental.pallas import tpu as pltpu


def _make_sab_kernel(heads, dv, matmul_dtype):
    """Builds the kernel with static head count / hidden dim / MXU dtype."""
    scale = 1.0 / math.sqrt(dv)
    ds = dv // heads

    def _layer_norm(x, gamma, beta, eps=1e-5):
        # PyTorch nn.LayerNorm over the last dim (biased variance, eps inside sqrt).
        mu = jnp.mean(x, axis=-1, keepdims=True)
        xc = x - mu
        var = jnp.mean(xc * xc, axis=-1, keepdims=True)
        return xc * jax.lax.rsqrt(var + eps) * gamma + beta

    def kernel(x_ref, wqkv_ref, bqkv_ref, wo_ref, bo_ref,
               g0_ref, beta0_ref, g1_ref, beta1_ref, o_ref):
        tb, n, dm = x_ref.shape
        x = x_ref[...].reshape(tb * n, dm)                       # (TB*N, Dm)

        # Fused Q|K|V projection: one (TB*N, Dm) @ (Dm, 3*Dv) MXU matmul, f32 accumulate.
        qkv = jnp.dot(x.astype(matmul_dtype), wqkv_ref[...].astype(matmul_dtype),
                      preferred_element_type=jnp.float32) + bqkv_ref[...]
        q = qkv[:, 0 * dv:1 * dv].reshape(tb, n, dv)
        k = qkv[:, 1 * dv:2 * dv].reshape(tb, n, dv)
        v = qkv[:, 2 * dv:3 * dv].reshape(tb, n, dv)

        # Per-head self-attention (heads is static -> unrolled at trace time).
        head_outs = []
        for h in range(heads):
            qh = q[..., h * ds:(h + 1) * ds]
            kh = k[..., h * ds:(h + 1) * ds]
            vh = v[..., h * ds:(h + 1) * ds]
            # Logits lane-major: (TB, N_query, N_key) with keys on the lane axis.
            s = jnp.einsum("bqd,bkd->bqk",
                           qh.astype(matmul_dtype), kh.astype(matmul_dtype),
                           preferred_element_type=jnp.float32) * scale
            m = jnp.max(s, axis=-1, keepdims=True)
            e = jnp.exp(s - m)
            a = e * pl.reciprocal(jnp.sum(e, axis=-1, keepdims=True), approx=True)
            head_outs.append(
                qh + jnp.einsum("bqk,bkd->bqd",
                                a.astype(matmul_dtype), vh.astype(matmul_dtype),
                                preferred_element_type=jnp.float32))
        o = head_outs[0] if heads == 1 else jnp.concatenate(head_outs, axis=-1)

        # LayerNorm0 -> residual relu(fc_o) -> LayerNorm1, all on (TB*N, Dv) rows, f32.
        o = _layer_norm(o.reshape(tb * n, dv), g0_ref[...], beta0_ref[...])
        fo = jnp.dot(o.astype(matmul_dtype), wo_ref[...].astype(matmul_dtype),
                     preferred_element_type=jnp.float32) + bo_ref[...]
        o = o + jnp.maximum(fo, 0.0)
        o = _layer_norm(o, g1_ref[...], beta1_ref[...])

        o_ref[...] = o.reshape(tb, n, dv).astype(o_ref.dtype)    # lane-dense store

    return kernel


def _pick_bags_per_step(batch, n, max_rows=512):
    """Largest TB dividing batch with TB*N <= max_rows while keeping >= 2 grid
    steps (so both v7x TensorCores get work)."""
    best = 1
    for cand in range(1, batch + 1):
        if batch % cand != 0 or cand * n > max_rows:
            continue
        if batch // cand >= 2:
            best = cand
    return best


def set_attention_block(x, wq, bq, wk, bk, wv, bv, wo, bo,
                        gamma0, beta0, gamma1, beta1, *,
                        heads=1, bags_per_step=None,
                        matmul_dtype=jnp.float32):
    """x: (B, N, d_model) f32. Weights stored (in_features, out_features)
    (i.e. PyTorch Linear weights transposed). Returns (B, N, d_hidden)."""
    B, N, Dm = x.shape
    Dv = wq.shape[1]
    assert Dv % heads == 0, "d_hidden must be divisible by heads"
    tb = bags_per_step if bags_per_step is not None else _pick_bags_per_step(B, N)
    assert B % tb == 0, "bags_per_step must divide batch"

    # Fuse Q/K/V projections into a single operand (one MXU matmul per step).
    wqkv = jnp.concatenate([wq, wk, wv], axis=1)                 # (Dm, 3*Dv)
    bqkv = jnp.concatenate([bq, bk, bv]).reshape(1, 3 * Dv)
    bo2 = bo.reshape(1, Dv)
    g0 = gamma0.reshape(1, Dv)
    b0 = beta0.reshape(1, Dv)
    g1 = gamma1.reshape(1, Dv)
    b1 = beta1.reshape(1, Dv)

    kernel = _make_sab_kernel(heads, Dv, matmul_dtype)
    rep = lambda b: (0, 0)                                       # weights: same block every step

    out = pl.pallas_call(
        kernel,
        out_shape=jax.ShapeDtypeStruct((B, N, Dv), jnp.float32),
        grid_spec=pltpu.PrefetchScalarGridSpec(
            num_scalar_prefetch=0,
            grid=(B // tb,),
            in_specs=[
                pl.BlockSpec((tb, N, Dm), lambda b: (b, 0, 0)),  # x: TB bags per step
                pl.BlockSpec((Dm, 3 * Dv), rep),                 # fused Wq|Wk|Wv
                pl.BlockSpec((1, 3 * Dv), rep),                  # fused bq|bk|bv
                pl.BlockSpec((Dv, Dv), rep),                     # Wo
                pl.BlockSpec((1, Dv), rep),                      # bo
                pl.BlockSpec((1, Dv), rep),                      # ln0 gamma
                pl.BlockSpec((1, Dv), rep),                      # ln0 beta
                pl.BlockSpec((1, Dv), rep),                      # ln1 gamma
                pl.BlockSpec((1, Dv), rep),                      # ln1 beta
            ],
            out_specs=pl.BlockSpec((tb, N, Dv), lambda b: (b, 0, 0)),
        ),
        compiler_params=pltpu.CompilerParams(
            dimension_semantics=("parallel",)),                  # bag axis -> megacore
    )(x, wqkv, bqkv, wo, bo2, g0, b0, g1, b1)
    return out


def _ref_forward(x, wq, bq, wk, bk, wv, bv, wo, bo,
                 gamma0, beta0, gamma1, beta1, heads):
    """Pure-JAX transcription of the PyTorch MAB(X, X) forward (correctness ref)."""
    dv = wq.shape[1]
    q = x @ wq + bq
    k = x @ wk + bk
    v = x @ wv + bv
    split_cat = lambda t: jnp.concatenate(jnp.split(t, heads, axis=2), axis=0)
    q_, k_, v_ = split_cat(q), split_cat(k), split_cat(v)
    a = jax.nn.softmax(
        jnp.einsum("bqd,bkd->bqk", q_, k_) / math.sqrt(dv), axis=-1)
    o = q_ + jnp.einsum("bqk,bkd->bqd", a, v_)
    o = jnp.concatenate(jnp.split(o, heads, axis=0), axis=2)
    ln = lambda t, g, b: ((t - t.mean(-1, keepdims=True))
                          * jax.lax.rsqrt(t.var(-1, keepdims=True) + 1e-5) * g + b)
    o = ln(o, gamma0, beta0)
    o = o + jax.nn.relu(o @ wo + bo)
    o = ln(o, gamma1, beta1)
    return o


if __name__ == "__main__":
    # Small shapes consistent with the module: B bags of N set elements,
    # d_model input features, d_hidden attention width, heads=1 (SAB default).
    B, N, d_model, d_hidden, heads = 4, 8, 32, 16, 1

    key = jax.random.PRNGKey(0)
    ks = jax.random.split(key, 14)
    x = jax.random.normal(ks[0], (B, N, d_model), dtype=jnp.float32)

    def xavier(k, fan_in, fan_out):
        bound = math.sqrt(6.0 / (fan_in + fan_out))
        return jax.random.uniform(k, (fan_in, fan_out), jnp.float32, -bound, bound)

    wq = xavier(ks[1], d_model, d_hidden)
    bq = 0.01 * jax.random.normal(ks[2], (d_hidden,), jnp.float32)
    wk = xavier(ks[3], d_model, d_hidden)
    bk = 0.01 * jax.random.normal(ks[4], (d_hidden,), jnp.float32)
    wv = xavier(ks[5], d_model, d_hidden)
    bv = 0.01 * jax.random.normal(ks[6], (d_hidden,), jnp.float32)
    wo = xavier(ks[7], d_hidden, d_hidden)
    bo = 0.01 * jax.random.normal(ks[8], (d_hidden,), jnp.float32)
    gamma0 = jnp.ones((d_hidden,), jnp.float32) + 0.05 * jax.random.normal(ks[9], (d_hidden,))
    beta0 = 0.05 * jax.random.normal(ks[10], (d_hidden,), jnp.float32)
    gamma1 = jnp.ones((d_hidden,), jnp.float32) + 0.05 * jax.random.normal(ks[11], (d_hidden,))
    beta1 = 0.05 * jax.random.normal(ks[12], (d_hidden,), jnp.float32)

    ref = _ref_forward(x, wq, bq, wk, bk, wv, bv, wo, bo,
                       gamma0, beta0, gamma1, beta1, heads)

    # f32 MXU path (approx EUP reciprocal in the softmax -> slightly loose tol).
    out = set_attention_block(x, wq, bq, wk, bk, wv, bv, wo, bo,
                              gamma0, beta0, gamma1, beta1,
                              heads=heads, matmul_dtype=jnp.float32)
    jax.block_until_ready(out)
    assert out.shape == (B, N, d_hidden)
    assert jnp.allclose(out, ref, atol=5e-3, rtol=5e-3)

    # bf16 MXU-operand path (v6e/v7x throughput mode); VPU/EUP math stays f32.
    out_bf16 = set_attention_block(x, wq, bq, wk, bk, wv, bv, wo, bo,
                                   gamma0, beta0, gamma1, beta1,
                                   heads=heads, matmul_dtype=jnp.bfloat16)
    jax.block_until_ready(out_bf16)
    assert jnp.allclose(out_bf16, ref, atol=5e-2, rtol=5e-2)

    print("KERNEL_OK")
</pallas_src>

<mosaic_0001>
module attributes {stable_mosaic.version = 11 : i64} {
  func.func @kernel(%arg0: i32, %arg1: memref<2x8x32xf32, #tpu.memory_space<vmem>>, %arg2: memref<32x48xf32, #tpu.memory_space<vmem>>, %arg3: memref<1x48xf32, #tpu.memory_space<vmem>>, %arg4: memref<16x16xf32, #tpu.memory_space<vmem>>, %arg5: memref<1x16xf32, #tpu.memory_space<vmem>>, %arg6: memref<1x16xf32, #tpu.memory_space<vmem>>, %arg7: memref<1x16xf32, #tpu.memory_space<vmem>>, %arg8: memref<1x16xf32, #tpu.memory_space<vmem>>, %arg9: memref<1x16xf32, #tpu.memory_space<vmem>>, %arg10: memref<2x8x16xf32, #tpu.memory_space<vmem>>) attributes {dimension_semantics = [#tpu.dimension_semantics<parallel>], iteration_bounds = array<i64: 2>, scalar_prefetch = 0 : i64, scratch_operands = 0 : i64, tpu.core_type = #tpu.core_type<tc>, window_params = [{transform_indices = @transform_0, window_bounds = array<i64: 2, 8, 32>}, {pipeline_mode = #tpu.pipeline_mode<synchronous>, transform_indices = @transform_1, window_bounds = array<i64: 32, 48>}, {pipeline_mode = #tpu.pipeline_mode<synchronous>, transform_indices = @transform_2, window_bounds = array<i64: 1, 48>}, {pipeline_mode = #tpu.pipeline_mode<synchronous>, transform_indices = @transform_3, window_bounds = array<i64: 16, 16>}, {pipeline_mode = #tpu.pipeline_mode<synchronous>, transform_indices = @transform_4, window_bounds = array<i64: 1, 16>}, {pipeline_mode = #tpu.pipeline_mode<synchronous>, transform_indices = @transform_5, window_bounds = array<i64: 1, 16>}, {pipeline_mode = #tpu.pipeline_mode<synchronous>, transform_indices = @transform_6, window_bounds = array<i64: 1, 16>}, {pipeline_mode = #tpu.pipeline_mode<synchronous>, transform_indices = @transform_7, window_bounds = array<i64: 1, 16>}, {pipeline_mode = #tpu.pipeline_mode<synchronous>, transform_indices = @transform_8, window_bounds = array<i64: 1, 16>}, {transform_indices = @transform_9, window_bounds = array<i64: 2, 8, 16>}]} {
    %c0 = arith.constant 0 : index
    %c0_0 = arith.constant 0 : index
    %c0_1 = arith.constant 0 : index
    %0 = vector.load %arg1[%c0, %c0_0, %c0_1] : memref<2x8x32xf32, #tpu.memory_space<vmem>>, vector<2x8x32xf32>
    %1 = vector.shape_cast %0 : vector<2x8x32xf32> to vector<16x32xf32>
    %c0_2 = arith.constant 0 : index
    %c0_3 = arith.constant 0 : index
    %2 = vector.load %arg2[%c0_2, %c0_3] : memref<32x48xf32, #tpu.memory_space<vmem>>, vector<32x48xf32>
    %cst = arith.constant dense<0.000000e+00> : vector<16x48xf32>
    %3 = tpu.matmul %1, %2, %cst {dimension_numbers = #tpu.dot_dimension_numbers<[1], [0], [0], [1], [0, 0, 1, 1], [], []>} : vector<16x32xf32>, vector<32x48xf32>, vector<16x48xf32> -> vector<16x48xf32>
    %c0_4 = arith.constant 0 : index
    %c0_5 = arith.constant 0 : index
    %4 = vector.load %arg3[%c0_4, %c0_5] : memref<1x48xf32, #tpu.memory_space<vmem>>, vector<1x48xf32>
    %5 = vector.broadcast %4 : vector<1x48xf32> to vector<16x48xf32>
    %6 = arith.addf %3, %5 : vector<16x48xf32>
    %7 = vector.extract_strided_slice %6 {offsets = [0, 0], sizes = [16, 16], strides = [1, 1]} : vector<16x48xf32> to vector<16x16xf32>
    %8 = vector.shape_cast %7 : vector<16x16xf32> to vector<2x8x16xf32>
    %9 = vector.extract_strided_slice %6 {offsets = [0, 16], sizes = [16, 16], strides = [1, 1]} : vector<16x48xf32> to vector<16x16xf32>
    %10 = vector.shape_cast %9 : vector<16x16xf32> to vector<2x8x16xf32>
    %11 = vector.extract_strided_slice %6 {offsets = [0, 32], sizes = [16, 16], strides = [1, 1]} : vector<16x48xf32> to vector<16x16xf32>
    %12 = vector.shape_cast %11 : vector<16x16xf32> to vector<2x8x16xf32>
    "tpu.trace_start"() <{level = 10 : i32, message = "bqd,bkd->bqk"}> : () -> ()
    %cst_6 = arith.constant dense<0.000000e+00> : vector<2x8x8xf32>
    %13 = tpu.matmul %8, %10, %cst_6 {dimension_numbers = #tpu.dot_dimension_numbers<[2], [2], [1], [1], [0, 0, 0, 1, 1, 1], [0], [0]>} : vector<2x8x16xf32>, vector<2x8x16xf32>, vector<2x8x8xf32> -> vector<2x8x8xf32>
    "tpu.trace_stop"() : () -> ()
    %cst_7 = arith.constant 2.500000e-01 : f32
    %14 = vector.broadcast %cst_7 : f32 to vector<2x8x8xf32>
    %15 = arith.mulf %13, %14 : vector<2x8x8xf32>
    %cst_8 = arith.constant dense<0xFF800000> : vector<2x8xf32>
    %16 = vector.multi_reduction <maximumf>, %15, %cst_8 [2] : vector<2x8x8xf32> to vector<2x8xf32>
    %17 = vector.shape_cast %16 : vector<2x8xf32> to vector<2x8x1xf32>
    %18 = vector.broadcast %17 : vector<2x8x1xf32> to vector<2x8x8xf32>
    %19 = arith.subf %15, %18 : vector<2x8x8xf32>
    %20 = math.exp %19 : vector<2x8x8xf32>
    %cst_9 = arith.constant dense<0.000000e+00> : vector<2x8xf32>
    %21 = vector.multi_reduction <add>, %20, %cst_9 [2] : vector<2x8x8xf32> to vector<2x8xf32>
    %22 = vector.shape_cast %21 : vector<2x8xf32> to vector<2x8x1xf32>
    %23 = tpu.reciprocal %22 {approx = true} : vector<2x8x1xf32> -> vector<2x8x1xf32>
    %24 = vector.broadcast %23 : vector<2x8x1xf32> to vector<2x8x8xf32>
    %25 = arith.mulf %20, %24 : vector<2x8x8xf32>
    "tpu.trace_start"() <{level = 10 : i32, message = "bqk,bkd->bqd"}> : () -> ()
    %cst_10 = arith.constant dense<0.000000e+00> : vector<2x8x16xf32>
    %26 = tpu.matmul %25, %12, %cst_10 {dimension_numbers = #tpu.dot_dimension_numbers<[2], [1], [1], [2], [0, 0, 0, 1, 1, 2], [0], [0]>} : vector<2x8x8xf32>, vector<2x8x16xf32>, vector<2x8x16xf32> -> vector<2x8x16xf32>
    "tpu.trace_stop"() : () -> ()
    %27 = arith.addf %8, %26 : vector<2x8x16xf32>
    %28 = vector.shape_cast %27 : vector<2x8x16xf32> to vector<16x16xf32>
    %c0_11 = arith.constant 0 : index
    %c0_12 = arith.constant 0 : index
    %29 = vector.load %arg6[%c0_11, %c0_12] : memref<1x16xf32, #tpu.memory_space<vmem>>, vector<1x16xf32>
    %c0_13 = arith.constant 0 : index
    %c0_14 = arith.constant 0 : index
    %30 = vector.load %arg7[%c0_13, %c0_14] : memref<1x16xf32, #tpu.memory_space<vmem>>, vector<1x16xf32>
    %cst_15 = arith.constant dense<0.000000e+00> : vector<16xf32>
    %31 = vector.multi_reduction <add>, %28, %cst_15 [1] : vector<16x16xf32> to vector<16xf32>
    %32 = vector.shape_cast %31 : vector<16xf32> to vector<16x1xf32>
    %cst_16 = arith.constant 1.600000e+01 : f32
    %33 = vector.broadcast %cst_16 : f32 to vector<16x1xf32>
    %34 = arith.divf %32, %33 : vector<16x1xf32>
    %35 = vector.broadcast %34 : vector<16x1xf32> to vector<16x16xf32>
    %36 = arith.subf %28, %35 : vector<16x16xf32>
    %37 = arith.mulf %36, %36 : vector<16x16xf32>
    %cst_17 = arith.constant dense<0.000000e+00> : vector<16xf32>
    %38 = vector.multi_reduction <add>, %37, %cst_17 [1] : vector<16x16xf32> to vector<16xf32>
    %39 = vector.shape_cast %38 : vector<16xf32> to vector<16x1xf32>
    %cst_18 = arith.constant 1.600000e+01 : f32
    %40 = vector.broadcast %cst_18 : f32 to vector<16x1xf32>
    %41 = arith.divf %39, %40 : vector<16x1xf32>
    %cst_19 = arith.constant 9.99999974E-6 : f32
    %42 = vector.broadcast %cst_19 : f32 to vector<16x1xf32>
    %43 = arith.addf %41, %42 : vector<16x1xf32>
    %44 = math.rsqrt %43 : vector<16x1xf32>
    %45 = vector.broadcast %44 : vector<16x1xf32> to vector<16x16xf32>
    %46 = arith.mulf %36, %45 : vector<16x16xf32>
    %47 = vector.broadcast %29 : vector<1x16xf32> to vector<16x16xf32>
    %48 = arith.mulf %46, %47 : vector<16x16xf32>
    %49 = vector.broadcast %30 : vector<1x16xf32> to vector<16x16xf32>
    %50 = arith.addf %48, %49 : vector<16x16xf32>
    %c0_20 = arith.constant 0 : index
    %c0_21 = arith.constant 0 : index
    %51 = vector.load %arg4[%c0_20, %c0_21] : memref<16x16xf32, #tpu.memory_space<vmem>>, vector<16x16xf32>
    %cst_22 = arith.constant dense<0.000000e+00> : vector<16x16xf32>
    %52 = tpu.matmul %50, %51, %cst_22 {dimension_numbers = #tpu.dot_dimension_numbers<[1], [0], [0], [1], [0, 0, 1, 1], [], []>} : vector<16x16xf32>, vector<16x16xf32>, vector<16x16xf32> -> vector<16x16xf32>
    %c0_23 = arith.constant 0 : index
    %c0_24 = arith.constant 0 : index
    %53 = vector.load %arg5[%c0_23, %c0_24] : memref<1x16xf32, #tpu.memory_space<vmem>>, vector<1x16xf32>
    %54 = vector.broadcast %53 : vector<1x16xf32> to vector<16x16xf32>
    %55 = arith.addf %52, %54 : vector<16x16xf32>
    %cst_25 = arith.constant 0.000000e+00 : f32
    %56 = vector.broadcast %cst_25 : f32 to vector<16x16xf32>
    %57 = arith.maximumf %55, %56 : vector<16x16xf32>
    %58 = arith.addf %50, %57 : vector<16x16xf32>
    %c0_26 = arith.constant 0 : index
    %c0_27 = arith.constant 0 : index
    %59 = vector.load %arg8[%c0_26, %c0_27] : memref<1x16xf32, #tpu.memory_space<vmem>>, vector<1x16xf32>
    %c0_28 = arith.constant 0 : index
    %c0_29 = arith.constant 0 : index
    %60 = vector.load %arg9[%c0_28, %c0_29] : memref<1x16xf32, #tpu.memory_space<vmem>>, vector<1x16xf32>
    %cst_30 = arith.constant dense<0.000000e+00> : vector<16xf32>
    %61 = vector.multi_reduction <add>, %58, %cst_30 [1] : vector<16x16xf32> to vector<16xf32>
    %62 = vector.shape_cast %61 : vector<16xf32> to vector<16x1xf32>
    %cst_31 = arith.constant 1.600000e+01 : f32
    %63 = vector.broadcast %cst_31 : f32 to vector<16x1xf32>
    %64 = arith.divf %62, %63 : vector<16x1xf32>
    %65 = vector.broadcast %64 : vector<16x1xf32> to vector<16x16xf32>
    %66 = arith.subf %58, %65 : vector<16x16xf32>
    %67 = arith.mulf %66, %66 : vector<16x16xf32>
    %cst_32 = arith.constant dense<0.000000e+00> : vector<16xf32>
    %68 = vector.multi_reduction <add>, %67, %cst_32 [1] : vector<16x16xf32> to vector<16xf32>
    %69 = vector.shape_cast %68 : vector<16xf32> to vector<16x1xf32>
    %cst_33 = arith.constant 1.600000e+01 : f32
    %70 = vector.broadcast %cst_33 : f32 to vector<16x1xf32>
    %71 = arith.divf %69, %70 : vector<16x1xf32>
    %cst_34 = arith.constant 9.99999974E-6 : f32
    %72 = vector.broadcast %cst_34 : f32 to vector<16x1xf32>
    %73 = arith.addf %71, %72 : vector<16x1xf32>
    %74 = math.rsqrt %73 : vector<16x1xf32>
    %75 = vector.broadcast %74 : vector<16x1xf32> to vector<16x16xf32>
    %76 = arith.mulf %66, %75 : vector<16x16xf32>
    %77 = vector.broadcast %59 : vector<1x16xf32> to vector<16x16xf32>
    %78 = arith.mulf %76, %77 : vector<16x16xf32>
    %79 = vector.broadcast %60 : vector<1x16xf32> to vector<16x16xf32>
    %80 = arith.addf %78, %79 : vector<16x16xf32>
    %81 = vector.shape_cast %80 : vector<16x16xf32> to vector<2x8x16xf32>
    %c0_35 = arith.constant 0 : index
    %c0_36 = arith.constant 0 : index
    %c0_37 = arith.constant 0 : index
    %82 = vector.load %arg10[%c0_35, %c0_36, %c0_37] : memref<2x8x16xf32, #tpu.memory_space<vmem>>, vector<2x8x16xf32>
    tpu.vector_store %arg10[%c0_35, %c0_36, %c0_37], %81 {strides = array<i32>} : memref<2x8x16xf32, #tpu.memory_space<vmem>>, vector<2x8x16xf32>,
    return
  }
  func.func @transform_0(%arg0: i32) -> (i32, i32, i32) {
    %c0_i32 = arith.constant 0 : i32
    %c0_i32_0 = arith.constant 0 : i32
    %c0_i32_1 = arith.constant 0 : i32
    return %arg0, %c0_i32, %c0_i32_0 : i32, i32, i32
  }
  func.func @transform_1(%arg0: i32) -> (i32, i32) {
    %c0_i32 = arith.constant 0 : i32
    %c0_i32_0 = arith.constant 0 : i32
    %c0_i32_1 = arith.constant 0 : i32
    return %c0_i32, %c0_i32_0 : i32, i32
  }
  func.func @transform_2(%arg0: i32) -> (i32, i32) {
    %c0_i32 = arith.constant 0 : i32
    %c0_i32_0 = arith.constant 0 : i32
    %c0_i32_1 = arith.constant 0 : i32
    return %c0_i32, %c0_i32_0 : i32, i32
  }
  func.func @transform_3(%arg0: i32) -> (i32, i32) {
    %c0_i32 = arith.constant 0 : i32
    %c0_i32_0 = arith.constant 0 : i32
    %c0_i32_1 = arith.constant 0 : i32
    return %c0_i32, %c0_i32_0 : i32, i32
  }
  func.func @transform_4(%arg0: i32) -> (i32, i32) {
    %c0_i32 = arith.constant 0 : i32
    %c0_i32_0 = arith.constant 0 : i32
    %c0_i32_1 = arith.constant 0 : i32
    return %c0_i32, %c0_i32_0 : i32, i32
  }
  func.func @transform_5(%arg0: i32) -> (i32, i32) {
    %c0_i32 = arith.constant 0 : i32
    %c0_i32_0 = arith.constant 0 : i32
    %c0_i32_1 = arith.constant 0 : i32
    return %c0_i32, %c0_i32_0 : i32, i32
  }
  func.func @transform_6(%arg0: i32) -> (i32, i32) {
    %c0_i32 = arith.constant 0 : i32
    %c0_i32_0 = arith.constant 0 : i32
    %c0_i32_1 = arith.constant 0 : i32
    return %c0_i32, %c0_i32_0 : i32, i32
  }
  func.func @transform_7(%arg0: i32) -> (i32, i32) {
    %c0_i32 = arith.constant 0 : i32
    %c0_i32_0 = arith.constant 0 : i32
    %c0_i32_1 = arith.constant 0 : i32
    return %c0_i32, %c0_i32_0 : i32, i32
  }
  func.func @transform_8(%arg0: i32) -> (i32, i32) {
    %c0_i32 = arith.constant 0 : i32
    %c0_i32_0 = arith.constant 0 : i32
    %c0_i32_1 = arith.constant 0 : i32
    return %c0_i32, %c0_i32_0 : i32, i32
  }
  func.func @transform_9(%arg0: i32) -> (i32, i32, i32) {
    %c0_i32 = arith.constant 0 : i32
    %c0_i32_0 = arith.constant 0 : i32
    %c0_i32_1 = arith.constant 0 : i32
    return %arg0, %c0_i32, %c0_i32_0 : i32, i32, i32
  }
}

</mosaic_0001>

<llo_original>
// kernel: tpu_custom_call.1
$region0: #{tpu_custom_call.1}
  #allocation0 [shape = 'u32[]', space=smem, size = 0x4, offset = 0x4, fixed_abs, tag = 'smem constant byte address 0x4 - core index']
  #allocation1 [shape = 'u32[144,128]{1,0:T(1,128)}', space=vmem, size = 0x12000, scoped, tag = 'internal scratch']
  %s0 = inlined_call_operand.hbm [shape: f32[4,8,32], index: 0, kind: input, shape index: {}]
  %s1 = inlined_call_operand.hbm [shape: f32[32,48], index: 1, kind: input, shape index: {}]
  %s2 = inlined_call_operand.vmem [shape: f32[1,48], index: 2, kind: input, shape index: {}]
  %s3 = inlined_call_operand.hbm [shape: f32[16,16], index: 3, kind: input, shape index: {}]
  %s4 = inlined_call_operand.vmem [shape: f32[1,16], index: 4, kind: input, shape index: {}]
  %s5 = inlined_call_operand.vmem [shape: f32[1,16], index: 5, kind: input, shape index: {}]
  %s6 = inlined_call_operand.vmem [shape: f32[1,16], index: 6, kind: input, shape index: {}]
  %s7 = inlined_call_operand.vmem [shape: f32[1,16], index: 7, kind: input, shape index: {}]
  %s8 = inlined_call_operand.vmem [shape: f32[1,16], index: 8, kind: input, shape index: {}]
  %s9 = inlined_call_operand.hbm [shape: f32[4,8,16], index: 9, kind: output, shape index: {}]
  %s10 = sld [smem:[#allocation0]]
  $region81: #{tpu_custom_call.1} parent=0
    _
  %s12 = ssub.s32 1, %s10
  %s13 = scalar_select 0, %s12, %s10
  $region1: #{tpu_custom_call.1} parent=0
    #allocation2 [shape = 'u8[16384]{0}', space=vmem, size = 0x4000, scoped, tag = 'input window, operand 0']
    #allocation3 [shape = 's32[2]{0}', space=sflag, size = 0x8, scoped, tag = 'scoped memory for tpu_custom_call.1']
    #allocation4 [shape = 's32[2]{0}', space=sflag, size = 0x8, scoped, tag = 'scoped memory for tpu_custom_call.1']
    #allocation5 [shape = 'u8[16384]{0}', space=vmem, size = 0x4000, scoped, tag = 'input window, operand 1, single buffered']
    #allocation6 [shape = 's32[1]{0}', space=sflag, size = 0x4, scoped, tag = 'scoped memory for tpu_custom_call.1']
    #allocation7 [shape = 'u8[8192]{0}', space=vmem, size = 0x2000, scoped, tag = 'input window, operand 3, single buffered']
    #allocation8 [shape = 'u8[16384]{0}', space=vmem, size = 0x4000, scoped, tag = 'output window, operand 0']
    %14 = vsyncpa [#allocation3], 0
    %s15 = scalar_lea.sflag [#allocation3], 1
    %16 = vsyncpa %s15, 0
    %17 = vsyncpa [#allocation6], 0
    %18 = vsyncpa [#allocation4], 0
    %s19 = scalar_lea.sflag [#allocation4], 1
    %20 = vsyncpa %s19, 0
    loop: start=0, step=1, limit=4
    $region2: #{tpu_custom_call.1} parent=1 // loop_pre_header
      _
    $region3: #{tpu_custom_call.1} parent=1 // loop_header
      %s22 = sphi 0, %s26
      %p23 = scmp.ge.s32.totalorder %s22, 4
      %s32 = sphi 0, %s34
      %s35 = sphi 0, %s32
      %s36 = sphi 0, %s35
      %s52 = sphi 0, %s36
      %s56 = sphi 0, %s56
      %s58 = sphi 0, %s56
      %s59 = sphi 0, %s58
      %s73 = sphi 0, %s59
      %s77 = sphi 0, %s77
      %s79 = sphi 0, %s77
      %s80 = sphi 0, %s79
      %s94 = sphi 0, %s80
      %s98 = sphi 0, %s98
      %s100 = sphi 0, %s98
      %s101 = sphi 0, %s100
      %s115 = sphi 0, %s101
      %s119 = sphi 0, %s119
      %s121 = sphi 0, %s119
      %s122 = sphi 0, %s121
      %s136 = sphi 0, %s122
      %s140 = sphi 0, %s140
      %s142 = sphi 0, %s140
      %s143 = sphi 0, %s142
      %s157 = sphi 0, %s143
      %s161 = sphi 0, %s161
      %s163 = sphi 0, %s161
      %s164 = sphi 0, %s163
      %s178 = sphi 0, %s164
      %s182 = sphi 0, %s182
      %s184 = sphi 0, %s182
      %s185 = sphi 0, %s184
      %s199 = sphi 0, %s185
      %s203 = sphi 0, %s203
      %s205 = sphi 0, %s203
      %s206 = sphi 0, %s205
      %s220 = sphi 0, %s206
      %s226 = sphi 0, %s228
      %s229 = sphi 0, %s226
      %s230 = sphi 0, %s229
      %s246 = sphi 0, %s230
    $region4: #{tpu_custom_call.1} parent=1 // loop_header_branch
      %25 = sbr.rel (%p23) target = $region8
    $region5: #{tpu_custom_call.1} parent=1 // loop_body
      %s27 = ssub.s32 %s22, 1
      %s28 = ssub.s32 %s22, 2
      %s29 = sadd.s32 %s22, 1
      %s30 = ssub.s32 %s22, %s29
      %p31 = scmp.eq.s32.totalorder %s30, 0
      %s33 = sadd.s32 %s32, 1
      %s34 = scalar_select %p31, %s32, %s33
      %p37 = pneg %p31
      %p38 = scmp.eq.s32.totalorder %s22, 1
      %p39 = por %p37, %p38
      %p40 = scmp.ne.s32.totalorder %s32, %s35
      %p41 = scmp.eq.s32.totalorder %s22, 0
      %p42 = por %p40, %p41
      %p43 = scmp.ne.s32.totalorder %s32, %s35
      %p44 = scmp.eq.s32.totalorder %s27, 1
      %p45 = por %p43, %p44
      %p46 = scmp.ne.s32.totalorder %s35, %s36
      %p47 = scmp.eq.s32.totalorder %s27, 0
      %p48 = por %p46, %p47
      %p49 = scmp.ne.s32.totalorder %s35, %s36
      %p50 = scmp.eq.s32.totalorder %s28, 1
      %p51 = por %p49, %p50
      %p53 = scmp.ne.s32.totalorder %s36, %s52
      %p54 = scmp.eq.s32.totalorder %s28, 0
      %p55 = por %p53, %p54
      %s57 = sadd.s32 %s56, 1
      %p60 = scmp.eq.s32.totalorder %s22, 1
      %p61 = scmp.ne.s32.totalorder %s56, %s58
      %p62 = scmp.eq.s32.totalorder %s22, 0
      %p63 = por %p61, %p62
      %p64 = scmp.ne.s32.totalorder %s56, %s58
      %p65 = scmp.eq.s32.totalorder %s27, 1
      %p66 = por %p64, %p65
      %p67 = scmp.ne.s32.totalorder %s58, %s59
      %p68 = scmp.eq.s32.totalorder %s27, 0
      %p69 = por %p67, %p68
      %p70 = scmp.ne.s32.totalorder %s58, %s59
      %p71 = scmp.eq.s32.totalorder %s28, 1
      %p72 = por %p70, %p71
      %p74 = scmp.ne.s32.totalorder %s59, %s73
      %p75 = scmp.eq.s32.totalorder %s28, 0
      %p76 = por %p74, %p75
      %s78 = sadd.s32 %s77, 1
      %p81 = scmp.eq.s32.totalorder %s22, 1
      %p82 = scmp.ne.s32.totalorder %s77, %s79
      %p83 = scmp.eq.s32.totalorder %s22, 0
      %p84 = por %p82, %p83
      %p85 = scmp.ne.s32.totalorder %s77, %s79
      %p86 = scmp.eq.s32.totalorder %s27, 1
      %p87 = por %p85, %p86
      %p88 = scmp.ne.s32.totalorder %s79, %s80
      %p89 = scmp.eq.s32.totalorder %s27, 0
      %p90 = por %p88, %p89
      %p91 = scmp.ne.s32.totalorder %s79, %s80
      %p92 = scmp.eq.s32.totalorder %s28, 1
      %p93 = por %p91, %p92
      %p95 = scmp.ne.s32.totalorder %s80, %s94
      %p96 = scmp.eq.s32.totalorder %s28, 0
      %p97 = por %p95, %p96
      %s99 = sadd.s32 %s98, 1
      %p102 = scmp.eq.s32.totalorder %s22, 1
      %p103 = scmp.ne.s32.totalorder %s98, %s100
      %p104 = scmp.eq.s32.totalorder %s22, 0
      %p105 = por %p103, %p104
      %p106 = scmp.ne.s32.totalorder %s98, %s100
      %p107 = scmp.eq.s32.totalorder %s27, 1
      %p108 = por %p106, %p107
      %p109 = scmp.ne.s32.totalorder %s100, %s101
      %p110 = scmp.eq.s32.totalorder %s27, 0
      %p111 = por %p109, %p110
      %p112 = scmp.ne.s32.totalorder %s100, %s101
      %p113 = scmp.eq.s32.totalorder %s28, 1
      %p114 = por %p112, %p113
      %p116 = scmp.ne.s32.totalorder %s101, %s115
      %p117 = scmp.eq.s32.totalorder %s28, 0
      %p118 = por %p116, %p117
      %s120 = sadd.s32 %s119, 1
      %p123 = scmp.eq.s32.totalorder %s22, 1
      %p124 = scmp.ne.s32.totalorder %s119, %s121
      %p125 = scmp.eq.s32.totalorder %s22, 0
      %p126 = por %p124, %p125
      %p127 = scmp.ne.s32.totalorder %s119, %s121
      %p128 = scmp.eq.s32.totalorder %s27, 1
      %p129 = por %p127, %p128
      %p130 = scmp.ne.s32.totalorder %s121, %s122
      %p131 = scmp.eq.s32.totalorder %s27, 0
      %p132 = por %p130, %p131
      %p133 = scmp.ne.s32.totalorder %s121, %s122
      %p134 = scmp.eq.s32.totalorder %s28, 1
      %p135 = por %p133, %p134
      %p137 = scmp.ne.s32.totalorder %s122, %s136
      %p138 = scmp.eq.s32.totalorder %s28, 0
      %p139 = por %p137, %p138
      %s141 = sadd.s32 %s140, 1
      %p144 = scmp.eq.s32.totalorder %s22, 1
      %p145 = scmp.ne.s32.totalorder %s140, %s142
      %p146 = scmp.eq.s32.totalorder %s22, 0
      %p147 = por %p145, %p146
      %p148 = scmp.ne.s32.totalorder %s140, %s142
      %p149 = scmp.eq.s32.totalorder %s27, 1
      %p150 = por %p148, %p149
      %p151 = scmp.ne.s32.totalorder %s142, %s143
      %p152 = scmp.eq.s32.totalorder %s27, 0
      %p153 = por %p151, %p152
      %p154 = scmp.ne.s32.totalorder %s142, %s143
      %p155 = scmp.eq.s32.totalorder %s28, 1
      %p156 = por %p154, %p155
      %p158 = scmp.ne.s32.totalorder %s143, %s157
      %p159 = scmp.eq.s32.totalorder %s28, 0
      %p160 = por %p158, %p159
      %s162 = sadd.s32 %s161, 1
      %p165 = scmp.eq.s32.totalorder %s22, 1
      %p166 = scmp.ne.s32.totalorder %s161, %s163
      %p167 = scmp.eq.s32.totalorder %s22, 0
      %p168 = por %p166, %p167
      %p169 = scmp.ne.s32.totalorder %s161, %s163
      %p170 = scmp.eq.s32.totalorder %s27, 1
      %p171 = por %p169, %p170
      %p172 = scmp.ne.s32.totalorder %s163, %s164
      %p173 = scmp.eq.s32.totalorder %s27, 0
      %p174 = por %p172, %p173
      %p175 = scmp.ne.s32.totalorder %s163, %s164
      %p176 = scmp.eq.s32.totalorder %s28, 1
      %p177 = por %p175, %p176
      %p179 = scmp.ne.s32.totalorder %s164, %s178
      %p180 = scmp.eq.s32.totalorder %s28, 0
      %p181 = por %p179, %p180
      %s183 = sadd.s32 %s182, 1
      %p186 = scmp.eq.s32.totalorder %s22, 1
      %p187 = scmp.ne.s32.totalorder %s182, %s184
      %p188 = scmp.eq.s32.totalorder %s22, 0
      %p189 = por %p187, %p188
      %p190 = scmp.ne.s32.totalorder %s182, %s184
      %p191 = scmp.eq.s32.totalorder %s27, 1
      %p192 = por %p190, %p191
      %p193 = scmp.ne.s32.totalorder %s184, %s185
      %p194 = scmp.eq.s32.totalorder %s27, 0
      %p195 = por %p193, %p194
      %p196 = scmp.ne.s32.totalorder %s184, %s185
      %p197 = scmp.eq.s32.totalorder %s28, 1
      %p198 = por %p196, %p197
      %p200 = scmp.ne.s32.totalorder %s185, %s199
      %p201 = scmp.eq.s32.totalorder %s28, 0
      %p202 = por %p200, %p201
      %s204 = sadd.s32 %s203, 1
      %p207 = scmp.eq.s32.totalorder %s22, 1
      %p208 = scmp.ne.s32.totalorder %s203, %s205
      %p209 = scmp.eq.s32.totalorder %s22, 0
      %p210 = por %p208, %p209
      %p211 = scmp.ne.s32.totalorder %s203, %s205
      %p212 = scmp.eq.s32.totalorder %s27, 1
      %p213 = por %p211, %p212
      %p214 = scmp.ne.s32.totalorder %s205, %s206
      %p215 = scmp.eq.s32.totalorder %s27, 0
      %p216 = por %p214, %p215
      %p217 = scmp.ne.s32.totalorder %s205, %s206
      %p218 = scmp.eq.s32.totalorder %s28, 1
      %p219 = por %p217, %p218
      %p221 = scmp.ne.s32.totalorder %s206, %s220
      %p222 = scmp.eq.s32.totalorder %s28, 0
      %p223 = por %p221, %p222
      %s224 = ssub.s32 %s22, %s29
      %p225 = scmp.eq.s32.totalorder %s224, 0
      %s227 = sadd.s32 %s226, 1
      %s228 = scalar_select %p225, %s226, %s227
      %p231 = pneg %p225
      %p232 = scmp.eq.s32.totalorder %s22, 1
      %p233 = por %p231, %p232
      %p234 = scmp.ne.s32.totalorder %s226, %s229
      %p235 = scmp.eq.s32.totalorder %s22, 0
      %p236 = por %p234, %p235
      %p237 = scmp.ne.s32.totalorder %s226, %s229
      %p238 = scmp.eq.s32.totalorder %s27, 1
      %p239 = por %p237, %p238
      %p240 = scmp.ne.s32.totalorder %s229, %s230
      %p241 = scmp.eq.s32.totalorder %s27, 0
      %p242 = por %p240, %p241
      %p243 = scmp.ne.s32.totalorder %s229, %s230
      %p244 = scmp.eq.s32.totalorder %s28, 1
      %p245 = por %p243, %p244
      %p247 = scmp.ne.s32.totalorder %s230, %s246
      %p248 = scmp.eq.s32.totalorder %s28, 0
      %p249 = por %p247, %p248
      %p250 = scmp.le.s32.totalorder 1, %s22
      %p251 = scmp.lt.s32.totalorder %s22, 3
      %p252 = pnand %p250, %p251
      %p253 = pneg %p252
      // Predicated region
      $region9: #{tpu_custom_call.1} parent=5 // pred_check
        _
      $region10: #{tpu_custom_call.1} parent=5 // pred_check_branch
        %255 = sbr.rel (%p252) target = $region12
      $region11: #{tpu_custom_call.1} parent=5 // pred_region
        %s256 = ssub.s32 %s22, 1
        // Predicated region
        $region13: #{tpu_custom_call.1} parent=11 // pred_check
          %p257 = pneg %p69
        $region14: #{tpu_custom_call.1} parent=11 // pred_check_branch
          %259 = sbr.rel (%p257) target = $region16
        $region15: #{tpu_custom_call.1} parent=11 // pred_region
          %s261 = ssub.s32 512, 512
          %262 = vsyncadd [#allocation6], %s261
          %s263 = sshll.u32 [#allocation5], 4
          %s264 = int_to_ptr.vmem [resolvable:$true] %s263
          %269 = dma.hbm_to_vmem [thread:$0]  %s1, 512, %s264, [#allocation6], 128, 128, 8
        $region16: #{tpu_custom_call.1} parent=11 // pred_fallthru
          _
        // Predicated region
        $region17: #{tpu_custom_call.1} parent=11 // pred_check
          %p270 = pneg %p90
        $region18: #{tpu_custom_call.1} parent=11 // pred_check_branch
          %272 = sbr.rel (%p270) target = $region20
        $region19: #{tpu_custom_call.1} parent=11 // pred_region
          _
        $region20: #{tpu_custom_call.1} parent=11 // pred_fallthru
          _
        // Predicated region
        $region21: #{tpu_custom_call.1} parent=11 // pred_check
          %p273 = pneg %p111
        $region22: #{tpu_custom_call.1} parent=11 // pred_check_branch
          %275 = sbr.rel (%p273) target = $region24
        $region23: #{tpu_custom_call.1} parent=11 // pred_region
          %s277 = ssub.s32 256, 256
          %278 = vsyncadd [#allocation6], %s277
          %s279 = sshll.u32 [#allocation7], 4
          %s280 = int_to_ptr.vmem [resolvable:$true] %s279
          %285 = dma.hbm_to_vmem [thread:$0]  %s3, 256, %s280, [#allocation6], 128, 128, 8
        $region24: #{tpu_custom_call.1} parent=11 // pred_fallthru
          _
        // Predicated region
        $region25: #{tpu_custom_call.1} parent=11 // pred_check
          %p286 = pneg %p132
        $region26: #{tpu_custom_call.1} parent=11 // pred_check_branch
          %288 = sbr.rel (%p286) target = $region28
        $region27: #{tpu_custom_call.1} parent=11 // pred_region
          _
        $region28: #{tpu_custom_call.1} parent=11 // pred_fallthru
          _
        // Predicated region
        $region29: #{tpu_custom_call.1} parent=11 // pred_check
          %p289 = pneg %p153
        $region30: #{tpu_custom_call.1} parent=11 // pred_check_branch
          %291 = sbr.rel (%p289) target = $region32
        $region31: #{tpu_custom_call.1} parent=11 // pred_region
          _
        $region32: #{tpu_custom_call.1} parent=11 // pred_fallthru
          _
        // Predicated region
        $region33: #{tpu_custom_call.1} parent=11 // pred_check
          %p292 = pneg %p174
        $region34: #{tpu_custom_call.1} parent=11 // pred_check_branch
          %294 = sbr.rel (%p292) target = $region36
        $region35: #{tpu_custom_call.1} parent=11 // pred_region
          _
        $region36: #{tpu_custom_call.1} parent=11 // pred_fallthru
          _
        // Predicated region
        $region37: #{tpu_custom_call.1} parent=11 // pred_check
          %p295 = pneg %p195
        $region38: #{tpu_custom_call.1} parent=11 // pred_check_branch
          %297 = sbr.rel (%p295) target = $region40
        $region39: #{tpu_custom_call.1} parent=11 // pred_region
          _
        $region40: #{tpu_custom_call.1} parent=11 // pred_fallthru
          _
        // Predicated region
        $region41: #{tpu_custom_call.1} parent=11 // pred_check
          %p298 = pneg %p216
        $region42: #{tpu_custom_call.1} parent=11 // pred_check_branch
          %300 = sbr.rel (%p298) target = $region44
        $region43: #{tpu_custom_call.1} parent=11 // pred_region
          _
        $region44: #{tpu_custom_call.1} parent=11 // pred_fallthru
          _
      $region12: #{tpu_custom_call.1} parent=5 // pred_fallthru
        _
      %p301 = scmp.lt.s32.totalorder %s22, 2
      // Predicated region
      $region45: #{tpu_custom_call.1} parent=5 // pred_check
        %p302 = pneg %p301
      $region46: #{tpu_custom_call.1} parent=5 // pred_check_branch
        %304 = sbr.rel (%p302) target = $region48
      $region47: #{tpu_custom_call.1} parent=5 // pred_region
        // Predicated region
        $region49: #{tpu_custom_call.1} parent=47 // pred_check
          %p305 = pneg %p42
        $region50: #{tpu_custom_call.1} parent=47 // pred_check_branch
          %307 = sbr.rel (%p305) target = $region52
        $region51: #{tpu_custom_call.1} parent=47 // pred_region
          %s308 = sand.u32 %s32, 1
          %s309 = scalar_lea.sflag [#allocation3], %s308
          %s310 = sand.u32 %s32, 1
          %s311 = smul.addr %s310, 16
          %s312 = scalar_lea.vmem [#allocation2], %s311
          %s313 = smul.u32 2, %s22
          %s315 = ssub.s32 256, 256
          %316 = vsyncadd %s309, %s315
          %s317 = smul.addr %s313, 128
          %s318 = scalar_lea.hbm %s0, %s317
          %s319 = sshll.u32 %s312, 4
          %s320 = int_to_ptr.vmem [resolvable:$true] %s319
          %325 = dma.hbm_to_vmem [thread:$0]  %s318, 256, %s320, %s309, 128, 128, 8
        $region52: #{tpu_custom_call.1} parent=47 // pred_fallthru
          _
      $region48: #{tpu_custom_call.1} parent=5 // pred_fallthru
        _
      %p326 = scmp.le.s32.totalorder 1, %s22
      %p327 = scmp.lt.s32.totalorder %s22, 3
      %p328 = pnand %p326, %p327
      %p329 = pneg %p328
      // Predicated region
      $region53: #{tpu_custom_call.1} parent=5 // pred_check
        _
      $region54: #{tpu_custom_call.1} parent=5 // pred_check_branch
        %331 = sbr.rel (%p328) target = $region56
      $region55: #{tpu_custom_call.1} parent=5 // pred_region
        %s332 = ssub.s32 %s22, 1
        %s333 = sand.u32 %s35, 1
        %s334 = scalar_lea.sflag [#allocation3], %s333
        %s335 = sand.u32 %s35, 1
        %s336 = smul.addr %s335, 16
        %s337 = scalar_lea.vmem [#allocation2], %s336
        // Predicated region
        $region57: #{tpu_custom_call.1} parent=55 // pred_check
          %p338 = pneg %p48
        $region58: #{tpu_custom_call.1} parent=55 // pred_check_branch
          %340 = sbr.rel (%p338) target = $region60
        $region59: #{tpu_custom_call.1} parent=55 // pred_region
          %341 = dma.done %s334, 256
        $region60: #{tpu_custom_call.1} parent=55 // pred_fallthru
          _
        // Predicated region
        $region61: #{tpu_custom_call.1} parent=55 // pred_check
          %p342 = pneg %p69
        $region62: #{tpu_custom_call.1} parent=55 // pred_check_branch
          %344 = sbr.rel (%p342) target = $region64
        $region63: #{tpu_custom_call.1} parent=55 // pred_region
          %345 = dma.done [#allocation6], 512
        $region64: #{tpu_custom_call.1} parent=55 // pred_fallthru
          _
        // Predicated region
        $region65: #{tpu_custom_call.1} parent=55 // pred_check
          %p346 = pneg %p111
        $region66: #{tpu_custom_call.1} parent=55 // pred_check_branch
          %348 = sbr.rel (%p346) target = $region68
        $region67: #{tpu_custom_call.1} parent=55 // pred_region
          %349 = dma.done [#allocation6], 256
        $region68: #{tpu_custom_call.1} parent=55 // pred_fallthru
          _
        %s350 = sand.u32 %s35, 1
        %s351 = scalar_lea.sflag [#allocation3], %s350
        %s352 = sand.u32 %s35, 1
        %s353 = smul.addr %s352, 16
        %s354 = scalar_lea.vmem [#allocation2], %s353
        %p355 = pneg %p48
        %p356 = pneg %p45
        %p357 = pneg %p69
        %p358 = pneg %p66
        %p359 = pneg %p90
        %p360 = pneg %p87
        %p361 = pneg %p111
        %p362 = pneg %p108
        %p363 = pneg %p132
        %p364 = pneg %p129
        %p365 = pneg %p153
        %p366 = pneg %p150
        %p367 = pneg %p174
        %p368 = pneg %p171
        %p369 = pneg %p195
        %p370 = pneg %p192
        %p371 = pneg %p216
        %p372 = pneg %p213
        %p373 = pneg %p242
        %p374 = pneg %p239
        %s375 = sand.u32 %s229, 1
        %s376 = scalar_lea.sflag [#allocation4], %s375
        %s377 = sand.u32 %s229, 1
        %s378 = smul.addr %s377, 16
        %s379 = scalar_lea.vmem [#allocation8], %s378
        %s380 = smul.u32 2, %s27
        %s381 = smul.u32 2, %s27
        %v382 = vld [vmem:[%s337] sm:$0xff]
        %v383 = vld [vmem:[%s337 + $0x8] sm:$0xff]
        %v384 = vld [vmem:[#allocation5] sm:$0xff]
        %v385 = vld [vmem:[#allocation5 + $0x8] sm:$0xff]
        %v386 = vld [vmem:[#allocation5 + $0x10] sm:$0xff]
        %v387 = vld [vmem:[#allocation5 + $0x18] sm:$0xff]
        %v388 = vld [vmem:[%s2] sm:$0x1]
        %v390 = vlaneseq
        %v391 = vshrl.u32 %v390, 7
        %v392 = vsub.s32 0, %v391
        %v393 = vrot.slane %v388, %v392
        %vm395 = vcmask 261120
        %v397 = vsel %vm395, %v382, 0
        %v400 = vsel %vm395, %v383, 0
        %402 = vmatprep.subr.mxu0 0.0
        %403 = vmatpush1.msra.mxu0 %v384
        %404 = vmatprep.subr.mxu0 0.0
        %405 = vmatpush1.msra.mxu0 %v385
        %406 = vmatprep.subr.mxu0 0.0
        %407 = vmatpush1.msra.mxu0 %v386
        %408 = vmatprep.subr.mxu0 0.0
        %409 = vmatpush1.msra.mxu0 %v387
        %410 = vmatprep.subr.mxu0 0.0
        %411 = vmatpush1.msra.mxu0 0.0
        %412 = vmatprep.subr.mxu0 0.0
        %413 = vmatpush1.msra.mxu0 0.0
        %414 = vmatprep.subr.mxu0 0.0
        %415 = vmatpush1.msra.mxu0 0.0
        %416 = vmatprep.subr.mxu0 0.0
        %417 = vmatpush1.msra.mxu0 0.0
        %418 = vmatprep.subr.mxu0 0.0
        %419 = vmatpush1.msra.mxu0 0.0
        %420 = vmatprep.subr.mxu0 0.0
        %421 = vmatpush1.msra.mxu0 0.0
        %422 = vmatprep.subr.mxu0 0.0
        %423 = vmatpush1.msra.mxu0 0.0
        %424 = vmatprep.subr.mxu0 0.0
        %425 = vmatpush1.msra.mxu0 0.0
        %426 = vmatprep.subr.mxu0 0.0
        %427 = vmatpush1.msra.mxu0 0.0
        %428 = vmatprep.subr.mxu0 0.0
        %429 = vmatpush1.msra.mxu0 0.0
        %430 = vmatprep.subr.mxu0 0.0
        %431 = vmatpush1.msra.mxu0 0.0
        %432 = vmatprep.subr.mxu0 0.0
        %433 = vmatpush1.msra.mxu0 0.0
        %434 = vmatprep.subr.mxu0 0.0
        %435 = vmatpush1.msra.mxu0 0.0
        %436 = vmatprep.subr.mxu0 0.0
        %437 = vmatpush1.msra.mxu0 0.0
        %438 = vmatprep.subr.mxu0 0.0
        %439 = vmatpush1.msra.mxu0 0.0
        %440 = vmatprep.subr.mxu0 0.0
        %441 = vmatpush1.msra.mxu0 0.0
        %442 = vmatprep.subr.mxu0 0.0
        %443 = vmatpush1.msra.mxu0 0.0
        %444 = vmatprep.subr.mxu0 0.0
        %445 = vmatpush1.msra.mxu0 0.0
        %446 = vmatprep.subr.mxu0 0.0
        %447 = vmatpush1.msra.mxu0 0.0
        %448 = vmatprep.subr.mxu0 0.0
        %449 = vmatpush1.msra.mxu0 0.0
        %450 = vmatprep.subr.mxu0 0.0
        %451 = vmatpush1.msra.mxu0 0.0
        %452 = vmatprep.subr.mxu0 0.0
        %453 = vmatpush1.msra.mxu0 0.0
        %454 = vmatprep.subr.mxu0 0.0
        %455 = vmatpush1.msra.mxu0 0.0
        %456 = vmatprep.subr.mxu0 0.0
        %457 = vmatpush1.msra.mxu0 0.0
        %458 = vmatprep.subr.mxu0 0.0
        %459 = vmatpush1.msra.mxu0 0.0
        %460 = vmatprep.subr.mxu0 0.0
        %461 = vmatpush1.msra.mxu0 0.0
        %462 = vmatprep.subr.mxu0 0.0
        %463 = vmatpush1.msra.mxu0 0.0
        %464 = vmatprep.subr.mxu0 0.0
        %465 = vmatpush1.msra.mxu0 0.0
        %466 = vmatprep.mubr.f32.mxu0 0.0
        %467 = vmatmul.mubr.f32.gmra.mrb[0].mxu0 %v397
        %v468 = vpop.f32.mrb[0].mxu0
        %v469 = vadd.f32 %v393, %v468
        %v470 = vpop.f32.mrb[0].mxu0
        %471 = vmatprep.mubr.f32.mxu0 0.0
        %472 = vmatmul.mubr.f32.gmra.mrb[0].mxu0 %v400
        %v473 = vpop.f32.mrb[0].mxu0
        %v474 = vadd.f32 %v393, %v473
        %v475 = vpop.f32.mrb[0].mxu0
        %476 = vdwg.mxu0
        %478 = vrot.lane.b32.xlu0 %v469, 112
        %v479 = vpop.permute.xlu0 %478
        %vm480 = vcmask 130048
        %v481 = vsel %vm480, %v469, 0
        %v483 = vsel %vm480, %v479, 0
        %485 = vmatprep.subr.mxu0 0.0
        %486 = vmatpush1.xpose.msra.mxu0 %v483
        %487 = vmatprep.subr.mxu0 0.0
        %488 = vmatpush1.xpose.msra.mxu0 0.0
        %489 = vmatprep.subr.mxu0 0.0
        %490 = vmatpush1.xpose.msra.mxu0 0.0
        %491 = vmatprep.subr.mxu0 0.0
        %492 = vmatpush1.xpose.msra.mxu0 0.0
        %493 = vmatprep.subr.mxu0 0.0
        %494 = vmatpush1.xpose.msra.mxu0 0.0
        %495 = vmatprep.subr.mxu0 0.0
        %496 = vmatpush1.xpose.msra.mxu0 0.0
        %497 = vmatprep.subr.mxu0 0.0
        %498 = vmatpush1.xpose.msra.mxu0 0.0
        %499 = vmatprep.subr.mxu0 0.0
        %500 = vmatpush1.xpose.msra.mxu0 0.0
        %501 = vmatprep.subr.mxu0 0.0
        %502 = vmatpush1.xpose.msra.mxu0 0.0
        %503 = vmatprep.subr.mxu0 0.0
        %504 = vmatpush1.xpose.msra.mxu0 0.0
        %505 = vmatprep.subr.mxu0 0.0
        %506 = vmatpush1.xpose.msra.mxu0 0.0
        %507 = vmatprep.subr.mxu0 0.0
        %508 = vmatpush1.xpose.msra.mxu0 0.0
        %509 = vmatprep.subr.mxu0 0.0
        %510 = vmatpush1.xpose.msra.mxu0 0.0
        %511 = vmatprep.subr.mxu0 0.0
        %512 = vmatpush1.xpose.msra.mxu0 0.0
        %513 = vmatprep.subr.mxu0 0.0
        %514 = vmatpush1.xpose.msra.mxu0 0.0
        %515 = vmatprep.subr.mxu0 0.0
        %516 = vmatpush1.xpose.msra.mxu0 0.0
        %517 = vmatprep.subr.mxu0 0.0
        %518 = vmatpush1.xpose.msra.mxu0 0.0
        %519 = vmatprep.subr.mxu0 0.0
        %520 = vmatpush1.xpose.msra.mxu0 0.0
        %521 = vmatprep.subr.mxu0 0.0
        %522 = vmatpush1.xpose.msra.mxu0 0.0
        %523 = vmatprep.subr.mxu0 0.0
        %524 = vmatpush1.xpose.msra.mxu0 0.0
        %525 = vmatprep.subr.mxu0 0.0
        %526 = vmatpush1.xpose.msra.mxu0 0.0
        %527 = vmatprep.subr.mxu0 0.0
        %528 = vmatpush1.xpose.msra.mxu0 0.0
        %529 = vmatprep.subr.mxu0 0.0
        %530 = vmatpush1.xpose.msra.mxu0 0.0
        %531 = vmatprep.subr.mxu0 0.0
        %532 = vmatpush1.xpose.msra.mxu0 0.0
        %533 = vmatprep.subr.mxu0 0.0
        %534 = vmatpush1.xpose.msra.mxu0 0.0
        %535 = vmatprep.subr.mxu0 0.0
        %536 = vmatpush1.xpose.msra.mxu0 0.0
        %537 = vmatprep.subr.mxu0 0.0
        %538 = vmatpush1.xpose.msra.mxu0 0.0
        %539 = vmatprep.subr.mxu0 0.0
        %540 = vmatpush1.xpose.msra.mxu0 0.0
        %541 = vmatprep.subr.mxu0 0.0
        %542 = vmatpush1.xpose.msra.mxu0 0.0
        %543 = vmatprep.subr.mxu0 0.0
        %544 = vmatpush1.xpose.msra.mxu0 0.0
        %545 = vmatprep.subr.mxu0 0.0
        %546 = vmatpush1.xpose.msra.mxu0 0.0
        %547 = vmatprep.subr.mxu0 0.0
        %548 = vmatpush1.xpose.msra.mxu0 0.0
        %549 = vmatprep.mubr.f32.mxu0 0.0
        %550 = vmatmul.mubr.f32.gmra.mrb[0].mxu0 %v481
        %v551 = vpop.f32.mrb[0].mxu0
        %v552 = vadd.f32 0.0, %v551
        %v553 = vpop.f32.mrb[0].mxu0
        %554 = vdwg.mxu0
        %556 = vrot.lane.b32.xlu0 %v474, 112
        %v557 = vpop.permute.xlu0 %556
        %v558 = vsel %vm480, %v474, 0
        %v560 = vsel %vm480, %v557, 0
        %562 = vmatprep.subr.mxu0 0.0
        %563 = vmatpush1.xpose.msra.mxu0 %v560
        %564 = vmatprep.subr.mxu0 0.0
        %565 = vmatpush1.xpose.msra.mxu0 0.0
        %566 = vmatprep.subr.mxu0 0.0
        %567 = vmatpush1.xpose.msra.mxu0 0.0
        %568 = vmatprep.subr.mxu0 0.0
        %569 = vmatpush1.xpose.msra.mxu0 0.0
        %570 = vmatprep.subr.mxu0 0.0
        %571 = vmatpush1.xpose.msra.mxu0 0.0
        %572 = vmatprep.subr.mxu0 0.0
        %573 = vmatpush1.xpose.msra.mxu0 0.0
        %574 = vmatprep.subr.mxu0 0.0
        %575 = vmatpush1.xpose.msra.mxu0 0.0
        %576 = vmatprep.subr.mxu0 0.0
        %577 = vmatpush1.xpose.msra.mxu0 0.0
        %578 = vmatprep.subr.mxu0 0.0
        %579 = vmatpush1.xpose.msra.mxu0 0.0
        %580 = vmatprep.subr.mxu0 0.0
        %581 = vmatpush1.xpose.msra.mxu0 0.0
        %582 = vmatprep.subr.mxu0 0.0
        %583 = vmatpush1.xpose.msra.mxu0 0.0
        %584 = vmatprep.subr.mxu0 0.0
        %585 = vmatpush1.xpose.msra.mxu0 0.0
        %586 = vmatprep.subr.mxu0 0.0
        %587 = vmatpush1.xpose.msra.mxu0 0.0
        %588 = vmatprep.subr.mxu0 0.0
        %589 = vmatpush1.xpose.msra.mxu0 0.0
        %590 = vmatprep.subr.mxu0 0.0
        %591 = vmatpush1.xpose.msra.mxu0 0.0
        %592 = vmatprep.subr.mxu0 0.0
        %593 = vmatpush1.xpose.msra.mxu0 0.0
        %594 = vmatprep.subr.mxu0 0.0
        %595 = vmatpush1.xpose.msra.mxu0 0.0
        %596 = vmatprep.subr.mxu0 0.0
        %597 = vmatpush1.xpose.msra.mxu0 0.0
        %598 = vmatprep.subr.mxu0 0.0
        %599 = vmatpush1.xpose.msra.mxu0 0.0
        %600 = vmatprep.subr.mxu0 0.0
        %601 = vmatpush1.xpose.msra.mxu0 0.0
        %602 = vmatprep.subr.mxu0 0.0
        %603 = vmatpush1.xpose.msra.mxu0 0.0
        %604 = vmatprep.subr.mxu0 0.0
        %605 = vmatpush1.xpose.msra.mxu0 0.0
        %606 = vmatprep.subr.mxu0 0.0
        %607 = vmatpush1.xpose.msra.mxu0 0.0
        %608 = vmatprep.subr.mxu0 0.0
        %609 = vmatpush1.xpose.msra.mxu0 0.0
        %610 = vmatprep.subr.mxu0 0.0
        %611 = vmatpush1.xpose.msra.mxu0 0.0
        %612 = vmatprep.subr.mxu0 0.0
        %613 = vmatpush1.xpose.msra.mxu0 0.0
        %614 = vmatprep.subr.mxu0 0.0
        %615 = vmatpush1.xpose.msra.mxu0 0.0
        %616 = vmatprep.subr.mxu0 0.0
        %617 = vmatpush1.xpose.msra.mxu0 0.0
        %618 = vmatprep.subr.mxu0 0.0
        %619 = vmatpush1.xpose.msra.mxu0 0.0
        %620 = vmatprep.subr.mxu0 0.0
        %621 = vmatpush1.xpose.msra.mxu0 0.0
        %622 = vmatprep.subr.mxu0 0.0
        %623 = vmatpush1.xpose.msra.mxu0 0.0
        %624 = vmatprep.subr.mxu0 0.0
        %625 = vmatpush1.xpose.msra.mxu0 0.0
        %626 = vmatprep.mubr.f32.mxu0 0.0
        %627 = vmatmul.mubr.f32.gmra.mrb[0].mxu0 %v558
        %v628 = vpop.f32.mrb[0].mxu0
        %v629 = vadd.f32 0.0, %v628
        %v630 = vpop.f32.mrb[0].mxu0
        %631 = vdwg.mxu0
        %v632 = vmul.f32 %v552, 0.25
        %v633 = vmul.f32 %v629, 0.25
        %vm634 = vcmask 64512
        %v635 = vsel %vm634, %v632, -inf
        %636 = vmax.xlane.f32.xlu0 %v635
        %v637 = vpop.xlane.xlu0 %636
        %v638 = vsel %vm634, %v633, -inf
        %639 = vmax.xlane.f32.xlu0 %v638
        %v640 = vpop.xlane.xlu0 %639
        %v641 = vsub.f32 %v632, %v637
        %v642 = vsub.f32 %v633, %v640
        %v643 = vmul.f32 %v641, 1.442695
        %v644 = vpow.pop %v643
        %v645 = vmul.f32 %v642, 1.442695
        %v646 = vpow.pop %v645
        %v647 = vsel %vm634, %v644, 0.0
        %648 = vadd.xlane.f32.xlu0 %v647
        %v649 = vpop.xlane.xlu0 %648
        %v650 = vsel %vm634, %v646, 0.0
        %651 = vadd.xlane.f32.xlu0 %v650
        %v652 = vpop.xlane.xlu0 %651
        %v653 = vrcp.pop %v649
        %v654 = vrcp.pop %v652
        %v655 = vmul.f32 %v644, %v653
        %v656 = vmul.f32 %v646, %v654
        %657 = vrot.lane.b32.xlu0 %v469, 96
        %v658 = vpop.permute.xlu0 %657
        %v661 = vsel %vm634, %v655, 0
        %663 = vmatprep.subr.mxu0 0.0
        %664 = vmatpush1.msra.mxu0 %v658
        %665 = vmatprep.subr.mxu0 0.0
        %666 = vmatpush1.msra.mxu0 0.0
        %667 = vmatprep.subr.mxu0 0.0
        %668 = vmatpush1.msra.mxu0 0.0
        %669 = vmatprep.subr.mxu0 0.0
        %670 = vmatpush1.msra.mxu0 0.0
        %671 = vmatprep.subr.mxu0 0.0
        %672 = vmatpush1.msra.mxu0 0.0
        %673 = vmatprep.subr.mxu0 0.0
        %674 = vmatpush1.msra.mxu0 0.0
        %675 = vmatprep.subr.mxu0 0.0
        %676 = vmatpush1.msra.mxu0 0.0
        %677 = vmatprep.subr.mxu0 0.0
        %678 = vmatpush1.msra.mxu0 0.0
        %679 = vmatprep.subr.mxu0 0.0
        %680 = vmatpush1.msra.mxu0 0.0
        %681 = vmatprep.subr.mxu0 0.0
        %682 = vmatpush1.msra.mxu0 0.0
        %683 = vmatprep.subr.mxu0 0.0
        %684 = vmatpush1.msra.mxu0 0.0
        %685 = vmatprep.subr.mxu0 0.0
        %686 = vmatpush1.msra.mxu0 0.0
        %687 = vmatprep.subr.mxu0 0.0
        %688 = vmatpush1.msra.mxu0 0.0
        %689 = vmatprep.subr.mxu0 0.0
        %690 = vmatpush1.msra.mxu0 0.0
        %691 = vmatprep.subr.mxu0 0.0
        %692 = vmatpush1.msra.mxu0 0.0
        %693 = vmatprep.subr.mxu0 0.0
        %694 = vmatpush1.msra.mxu0 0.0
        %695 = vmatprep.subr.mxu0 0.0
        %696 = vmatpush1.msra.mxu0 0.0
        %697 = vmatprep.subr.mxu0 0.0
        %698 = vmatpush1.msra.mxu0 0.0
        %699 = vmatprep.subr.mxu0 0.0
        %700 = vmatpush1.msra.mxu0 0.0
        %701 = vmatprep.subr.mxu0 0.0
        %702 = vmatpush1.msra.mxu0 0.0
        %703 = vmatprep.subr.mxu0 0.0
        %704 = vmatpush1.msra.mxu0 0.0
        %705 = vmatprep.subr.mxu0 0.0
        %706 = vmatpush1.msra.mxu0 0.0
        %707 = vmatprep.subr.mxu0 0.0
        %708 = vmatpush1.msra.mxu0 0.0
        %709 = vmatprep.subr.mxu0 0.0
        %710 = vmatpush1.msra.mxu0 0.0
        %711 = vmatprep.subr.mxu0 0.0
        %712 = vmatpush1.msra.mxu0 0.0
        %713 = vmatprep.subr.mxu0 0.0
        %714 = vmatpush1.msra.mxu0 0.0
        %715 = vmatprep.subr.mxu0 0.0
        %716 = vmatpush1.msra.mxu0 0.0
        %717 = vmatprep.subr.mxu0 0.0
        %718 = vmatpush1.msra.mxu0 0.0
        %719 = vmatprep.subr.mxu0 0.0
        %720 = vmatpush1.msra.mxu0 0.0
        %721 = vmatprep.subr.mxu0 0.0
        %722 = vmatpush1.msra.mxu0 0.0
        %723 = vmatprep.subr.mxu0 0.0
        %724 = vmatpush1.msra.mxu0 0.0
        %725 = vmatprep.subr.mxu0 0.0
        %726 = vmatpush1.msra.mxu0 0.0
        %727 = vmatprep.mubr.f32.mxu0 0.0
        %728 = vmatmul.mubr.f32.gmra.mrb[0].mxu0 %v661
        %v729 = vpop.f32.mrb[0].mxu0
        %v730 = vadd.f32 0.0, %v729
        %v731 = vpop.f32.mrb[0].mxu0
        %732 = vdwg.mxu0
        %733 = vrot.lane.b32.xlu0 %v474, 96
        %v734 = vpop.permute.xlu0 %733
        %v737 = vsel %vm634, %v656, 0
        %739 = vmatprep.subr.mxu0 0.0
        %740 = vmatpush1.msra.mxu0 %v734
        %741 = vmatprep.subr.mxu0 0.0
        %742 = vmatpush1.msra.mxu0 0.0
        %743 = vmatprep.subr.mxu0 0.0
        %744 = vmatpush1.msra.mxu0 0.0
        %745 = vmatprep.subr.mxu0 0.0
        %746 = vmatpush1.msra.mxu0 0.0
        %747 = vmatprep.subr.mxu0 0.0
        %748 = vmatpush1.msra.mxu0 0.0
        %749 = vmatprep.subr.mxu0 0.0
        %750 = vmatpush1.msra.mxu0 0.0
        %751 = vmatprep.subr.mxu0 0.0
        %752 = vmatpush1.msra.mxu0 0.0
        %753 = vmatprep.subr.mxu0 0.0
        %754 = vmatpush1.msra.mxu0 0.0
        %755 = vmatprep.subr.mxu0 0.0
        %756 = vmatpush1.msra.mxu0 0.0
        %757 = vmatprep.subr.mxu0 0.0
        %758 = vmatpush1.msra.mxu0 0.0
        %759 = vmatprep.subr.mxu0 0.0
        %760 = vmatpush1.msra.mxu0 0.0
        %761 = vmatprep.subr.mxu0 0.0
        %762 = vmatpush1.msra.mxu0 0.0
        %763 = vmatprep.subr.mxu0 0.0
        %764 = vmatpush1.msra.mxu0 0.0
        %765 = vmatprep.subr.mxu0 0.0
        %766 = vmatpush1.msra.mxu0 0.0
        %767 = vmatprep.subr.mxu0 0.0
        %768 = vmatpush1.msra.mxu0 0.0
        %769 = vmatprep.subr.mxu0 0.0
        %770 = vmatpush1.msra.mxu0 0.0
        %771 = vmatprep.subr.mxu0 0.0
        %772 = vmatpush1.msra.mxu0 0.0
        %773 = vmatprep.subr.mxu0 0.0
        %774 = vmatpush1.msra.mxu0 0.0
        %775 = vmatprep.subr.mxu0 0.0
        %776 = vmatpush1.msra.mxu0 0.0
        %777 = vmatprep.subr.mxu0 0.0
        %778 = vmatpush1.msra.mxu0 0.0
        %779 = vmatprep.subr.mxu0 0.0
        %780 = vmatpush1.msra.mxu0 0.0
        %781 = vmatprep.subr.mxu0 0.0
        %782 = vmatpush1.msra.mxu0 0.0
        %783 = vmatprep.subr.mxu0 0.0
        %784 = vmatpush1.msra.mxu0 0.0
        %785 = vmatprep.subr.mxu0 0.0
        %786 = vmatpush1.msra.mxu0 0.0
        %787 = vmatprep.subr.mxu0 0.0
        %788 = vmatpush1.msra.mxu0 0.0
        %789 = vmatprep.subr.mxu0 0.0
        %790 = vmatpush1.msra.mxu0 0.0
        %791 = vmatprep.subr.mxu0 0.0
        %792 = vmatpush1.msra.mxu0 0.0
        %793 = vmatprep.subr.mxu0 0.0
        %794 = vmatpush1.msra.mxu0 0.0
        %795 = vmatprep.subr.mxu0 0.0
        %796 = vmatpush1.msra.mxu0 0.0
        %797 = vmatprep.subr.mxu0 0.0
        %798 = vmatpush1.msra.mxu0 0.0
        %799 = vmatprep.subr.mxu0 0.0
        %800 = vmatpush1.msra.mxu0 0.0
        %801 = vmatprep.subr.mxu0 0.0
        %802 = vmatpush1.msra.mxu0 0.0
        %803 = vmatprep.mubr.f32.mxu0 0.0
        %804 = vmatmul.mubr.f32.gmra.mrb[0].mxu0 %v737
        %v805 = vpop.f32.mrb[0].mxu0
        %v806 = vadd.f32 0.0, %v805
        %v807 = vpop.f32.mrb[0].mxu0
        %808 = vdwg.mxu0
        %v809 = vadd.f32 %v469, %v730
        %v810 = vadd.f32 %v474, %v806
        %v811 = vld [vmem:[%s5] sm:$0x1]
        %v812 = vld [vmem:[%s6] sm:$0x1]
        %v813 = vsel %vm480, %v809, 0.0
        %814 = vadd.xlane.f32.xlu0 %v813
        %v815 = vpop.xlane.xlu0 %814
        %v816 = vsel %vm480, %v810, 0.0
        %817 = vadd.xlane.f32.xlu0 %v816
        %v818 = vpop.xlane.xlu0 %817
        %v819 = vrcp.pop 16.0
        %v820 = vmul.f32 %v815, %v819
        %v821 = vmul.f32 %v818, %v819
        %v822 = vsub.f32 %v809, %v820
        %v823 = vsub.f32 %v810, %v821
        %v824 = vmul.f32 %v822, %v822
        %v825 = vmul.f32 %v823, %v823
        %v826 = vsel %vm480, %v824, 0.0
        %827 = vadd.xlane.f32.xlu0 %v826
        %v828 = vpop.xlane.xlu0 %827
        %v829 = vsel %vm480, %v825, 0.0
        %830 = vadd.xlane.f32.xlu0 %v829
        %v831 = vpop.xlane.xlu0 %830
        %v832 = vmul.f32 %v828, %v819
        %v833 = vmul.f32 %v831, %v819
        %v834 = vadd.f32 %v832, 1e-05
        %v835 = vadd.f32 %v833, 1e-05
        %v836 = vrsqrt.pop %v834
        %v837 = vrsqrt.pop %v835
        %v838 = vmul.f32 %v822, %v836
        %v839 = vmul.f32 %v823, %v837
        %v841 = vlaneseq
        %v842 = vshrl.u32 %v841, 7
        %v843 = vsub.s32 0, %v842
        %v844 = vrot.slane %v811, %v843
        %v846 = vmul.f32 %v838, %v844
        %v847 = vmul.f32 %v839, %v844
        %v849 = vlaneseq
        %v850 = vshrl.u32 %v849, 7
        %v851 = vsub.s32 0, %v850
        %v852 = vrot.slane %v812, %v851
        %v854 = vadd.f32 %v846, %v852
        %v855 = vadd.f32 %v847, %v852
        %v856 = vld [vmem:[#allocation7] sm:$0xff]
        %v857 = vld [vmem:[#allocation7 + $0x8] sm:$0xff]
        %v858 = vld [vmem:[%s4] sm:$0x1]
        %v860 = vlaneseq
        %v861 = vshrl.u32 %v860, 7
        %v862 = vsub.s32 0, %v861
        %v863 = vrot.slane %v858, %v862
        %v866 = vsel %vm480, %v854, 0
        %v869 = vsel %vm480, %v855, 0
        %871 = vmatprep.subr.mxu0 0.0
        %872 = vmatpush1.msra.mxu0 %v856
        %873 = vmatprep.subr.mxu0 0.0
        %874 = vmatpush1.msra.mxu0 %v857
        %875 = vmatprep.subr.mxu0 0.0
        %876 = vmatpush1.msra.mxu0 0.0
        %877 = vmatprep.subr.mxu0 0.0
        %878 = vmatpush1.msra.mxu0 0.0
        %879 = vmatprep.subr.mxu0 0.0
        %880 = vmatpush1.msra.mxu0 0.0
        %881 = vmatprep.subr.mxu0 0.0
        %882 = vmatpush1.msra.mxu0 0.0
        %883 = vmatprep.subr.mxu0 0.0
        %884 = vmatpush1.msra.mxu0 0.0
        %885 = vmatprep.subr.mxu0 0.0
        %886 = vmatpush1.msra.mxu0 0.0
        %887 = vmatprep.subr.mxu0 0.0
        %888 = vmatpush1.msra.mxu0 0.0
        %889 = vmatprep.subr.mxu0 0.0
        %890 = vmatpush1.msra.mxu0 0.0
        %891 = vmatprep.subr.mxu0 0.0
        %892 = vmatpush1.msra.mxu0 0.0
        %893 = vmatprep.subr.mxu0 0.0
        %894 = vmatpush1.msra.mxu0 0.0
        %895 = vmatprep.subr.mxu0 0.0
        %896 = vmatpush1.msra.mxu0 0.0
        %897 = vmatprep.subr.mxu0 0.0
        %898 = vmatpush1.msra.mxu0 0.0
        %899 = vmatprep.subr.mxu0 0.0
        %900 = vmatpush1.msra.mxu0 0.0
        %901 = vmatprep.subr.mxu0 0.0
        %902 = vmatpush1.msra.mxu0 0.0
        %903 = vmatprep.subr.mxu0 0.0
        %904 = vmatpush1.msra.mxu0 0.0
        %905 = vmatprep.subr.mxu0 0.0
        %906 = vmatpush1.msra.mxu0 0.0
        %907 = vmatprep.subr.mxu0 0.0
        %908 = vmatpush1.msra.mxu0 0.0
        %909 = vmatprep.subr.mxu0 0.0
        %910 = vmatpush1.msra.mxu0 0.0
        %911 = vmatprep.subr.mxu0 0.0
        %912 = vmatpush1.msra.mxu0 0.0
        %913 = vmatprep.subr.mxu0 0.0
        %914 = vmatpush1.msra.mxu0 0.0
        %915 = vmatprep.subr.mxu0 0.0
        %916 = vmatpush1.msra.mxu0 0.0
        %917 = vmatprep.subr.mxu0 0.0
        %918 = vmatpush1.msra.mxu0 0.0
        %919 = vmatprep.subr.mxu0 0.0
        %920 = vmatpush1.msra.mxu0 0.0
        %921 = vmatprep.subr.mxu0 0.0
        %922 = vmatpush1.msra.mxu0 0.0
        %923 = vmatprep.subr.mxu0 0.0
        %924 = vmatpush1.msra.mxu0 0.0
        %925 = vmatprep.subr.mxu0 0.0
        %926 = vmatpush1.msra.mxu0 0.0
        %927 = vmatprep.subr.mxu0 0.0
        %928 = vmatpush1.msra.mxu0 0.0
        %929 = vmatprep.subr.mxu0 0.0
        %930 = vmatpush1.msra.mxu0 0.0
        %931 = vmatprep.subr.mxu0 0.0
        %932 = vmatpush1.msra.mxu0 0.0
        %933 = vmatprep.subr.mxu0 0.0
        %934 = vmatpush1.msra.mxu0 0.0
        %935 = vmatprep.mubr.f32.mxu0 0.0
        %936 = vmatmul.mubr.f32.gmra.mrb[0].mxu0 %v866
        %v937 = vpop.f32.mrb[0].mxu0
        %v938 = vadd.f32 %v863, %v937
        %v939 = vpop.f32.mrb[0].mxu0
        %940 = vmatprep.mubr.f32.mxu0 0.0
        %941 = vmatmul.mubr.f32.gmra.mrb[0].mxu0 %v869
        %v942 = vpop.f32.mrb[0].mxu0
        %v943 = vadd.f32 %v863, %v942
        %v944 = vpop.f32.mrb[0].mxu0
        %945 = vdwg.mxu0
        %v946 = vmax.f32 %v938, 0.0
        %v947 = vmax.f32 %v943, 0.0
        %v948 = vadd.f32 %v854, %v946
        %v949 = vadd.f32 %v855, %v947
        %v950 = vld [vmem:[%s7] sm:$0x1]
        %v951 = vld [vmem:[%s8] sm:$0x1]
        %v952 = vsel %vm480, %v948, 0.0
        %953 = vadd.xlane.f32.xlu0 %v952
        %v954 = vpop.xlane.xlu0 %953
        %v955 = vsel %vm480, %v949, 0.0
        %956 = vadd.xlane.f32.xlu0 %v955
        %v957 = vpop.xlane.xlu0 %956
        %v958 = vmul.f32 %v954, %v819
        %v959 = vmul.f32 %v957, %v819
        %v960 = vsub.f32 %v948, %v958
        %v961 = vsub.f32 %v949, %v959
        %v962 = vmul.f32 %v960, %v960
        %v963 = vmul.f32 %v961, %v961
        %v964 = vsel %vm480, %v962, 0.0
        %965 = vadd.xlane.f32.xlu0 %v964
        %v966 = vpop.xlane.xlu0 %965
        %v967 = vsel %vm480, %v963, 0.0
        %968 = vadd.xlane.f32.xlu0 %v967
        %v969 = vpop.xlane.xlu0 %968
        %v970 = vmul.f32 %v966, %v819
        %v971 = vmul.f32 %v969, %v819
        %v972 = vadd.f32 %v970, 1e-05
        %v973 = vadd.f32 %v971, 1e-05
        %v974 = vrsqrt.pop %v972
        %v975 = vrsqrt.pop %v973
        %v976 = vmul.f32 %v960, %v974
        %v977 = vmul.f32 %v961, %v975
        %v979 = vlaneseq
        %v980 = vshrl.u32 %v979, 7
        %v981 = vsub.s32 0, %v980
        %v982 = vrot.slane %v950, %v981
        %v984 = vmul.f32 %v976, %v982
        %v985 = vmul.f32 %v977, %v982
        %v987 = vlaneseq
        %v988 = vshrl.u32 %v987, 7
        %v989 = vsub.s32 0, %v988
        %v990 = vrot.slane %v951, %v989
        %v992 = vadd.f32 %v984, %v990
        %v993 = vadd.f32 %v985, %v990
        %994 = vst.msk [vmem:[%s379] sm:$0xff] %vm480, %v992
        %995 = vst.msk [vmem:[%s379 + $0x8] sm:$0xff] %vm480, %v993
        %s996 = sand.u32 %s229, 1
        %s997 = scalar_lea.sflag [#allocation4], %s996
        %s998 = sand.u32 %s229, 1
        %s999 = smul.addr %s998, 16
        %s1000 = scalar_lea.vmem [#allocation8], %s999
        // Predicated region
        $region69: #{tpu_custom_call.1} parent=55 // pred_check
          %p1001 = pneg %p239
        $region70: #{tpu_custom_call.1} parent=55 // pred_check_branch
          %1003 = sbr.rel (%p1001) target = $region72
        $region71: #{tpu_custom_call.1} parent=55 // pred_region
          %s1004 = smul.u32 2, %s27
          %s1006 = ssub.s32 256, 256
          %1007 = vsyncadd %s997, %s1006
          %s1008 = smul.addr %s1004, 128
          %s1009 = scalar_lea.hbm %s9, %s1008
          %s1010 = sshll.u32 %s1000, 4
          %s1011 = int_to_ptr.vmem [resolvable:$true] %s1010
          %1016 = dma.vmem_to_hbm [thread:$0]  %s1011, 256, %s1009, %s997, 128, 128, 8
        $region72: #{tpu_custom_call.1} parent=55 // pred_fallthru
          _
      $region56: #{tpu_custom_call.1} parent=5 // pred_fallthru
        _
      %p1017 = scmp.le.s32.totalorder 2, %s22
      // Predicated region
      $region73: #{tpu_custom_call.1} parent=5 // pred_check
        %p1018 = pneg %p1017
      $region74: #{tpu_custom_call.1} parent=5 // pred_check_branch
        %1020 = sbr.rel (%p1018) target = $region76
      $region75: #{tpu_custom_call.1} parent=5 // pred_region
        %s1021 = ssub.s32 %s22, 2
        // Predicated region
        $region77: #{tpu_custom_call.1} parent=75 // pred_check
          %p1022 = pneg %p245
        $region78: #{tpu_custom_call.1} parent=75 // pred_check_branch
          %1024 = sbr.rel (%p1022) target = $region80
        $region79: #{tpu_custom_call.1} parent=75 // pred_region
          %s1025 = sand.u32 %s230, 1
          %s1026 = scalar_lea.sflag [#allocation4], %s1025
          %s1027 = sand.u32 %s230, 1
          %s1028 = smul.addr %s1027, 16
          %s1029 = scalar_lea.vmem [#allocation8], %s1028
          %1030 = dma.done %s1026, 256
        $region80: #{tpu_custom_call.1} parent=75 // pred_fallthru
          _
      $region76: #{tpu_custom_call.1} parent=5 // pred_fallthru
        _
    $region6: #{tpu_custom_call.1} parent=1 // loop_footer
      %s26 = sadd.s32 1, %s22
    $region7: #{tpu_custom_call.1} parent=1 // loop_footer_branch
      %21 = sbr.rel target = $region3
    $region8: #{tpu_custom_call.1} parent=1 // loop_exit
      _
    %1031 = vsyncpa [#allocation3], 1
    %s1032 = scalar_lea.sflag [#allocation3], 1
    %1033 = vsyncpa %s1032, 1
    %1034 = vsyncpa [#allocation6], 1
    %1035 = vsyncpa [#allocation4], 1
    %s1036 = scalar_lea.sflag [#allocation4], 1
    %1037 = vsyncpa %s1036, 1

</llo_original>
